<compile_context>
chip_gen: v7x
topology: tpu7x:2x2x1
jax: 0.10.0
libtpu: 0.0.40
codegen_flags: <defaults>
</compile_context>

<pallas_src>
import functools

import jax
import jax.numpy as jnp
from jax import lax
from jax.experimental import pallas as pl
from jax.experimental.pallas import tpu as pltpu


_LANES = 128
# 8192 rows x 128 lanes = 4 MiB per f32 block (8 MiB double-buffered).
_MAX_TILE_ROWS = 8192
# Below this many reduced elements a fused XLA reduction beats launch+pipeline
# overhead; the Pallas path can still be forced for tests.
_MIN_PALLAS_ELEMS = 1 << 20


def _channel_loss_kernel(x_ref, cv_ref, out_ref, acc_ref, *,
                         reg, inv_n, tile_rows, total_rows, mask_tail):
    # x_ref  : (tile_rows, 128) tile of the selected channel (original dtype)
    # cv_ref : (1, 128) class vector, resident across the grid
    # out_ref: (8, 128) per-batch partial-result block (f32), resident over t
    # acc_ref: (8, 128) f32 per-sublane/per-lane partial-sum accumulator
    b = pl.program_id(0)
    t = pl.program_id(1)
    last_b = pl.num_programs(0) - 1
    last_t = pl.num_programs(1) - 1

    @pl.when(t == 0)
    def _init():
        acc_ref[...] = jnp.zeros_like(acc_ref)

    x = x_ref[...].astype(jnp.float32)
    if mask_tail:
        # Zero rows past the true extent of the last (ragged) tile.
        row_ids = t * tile_rows + lax.broadcasted_iota(
            jnp.int32, (tile_rows, 1), 0)
        x = jnp.where(row_ids < total_rows, x, 0.0)

    if tile_rows % 8 == 0:
        # Fold whole (8,128) vreg tiles into the resident accumulator: the hot
        # loop is pure vld+vadd, no cross-sublane/lane reduction.
        acc_ref[...] += jnp.sum(x.reshape(tile_rows // 8, 8, _LANES), axis=0)
    else:
        # Tiny single-tile case (tile_rows == total_rows, not 8-aligned).
        acc_ref[0:1, :] = acc_ref[0:1, :] + jnp.sum(x, axis=0, keepdims=True)

    @pl.when(t == last_t)
    def _finalize():
        res = acc_ref[...] * inv_n
        # Spread reg * class_vector**2 over the 8 sublanes of the last batch's
        # block; the wrapper's final sum recovers exactly reg * ||cv||^2.
        cv = cv_ref[...].astype(jnp.float32)
        is_last_b = (b == last_b).astype(jnp.float32)
        out_ref[...] = res + is_last_b * ((reg / 8.0) * (cv * cv))


def channel_activation_with_class_reg(mappings, class_vector, *, channel, reg,
                                       force_pallas=False):
    """Forward of ChannelActivationWithClassRegularization.

    mappings     : [B, C, H, W] activations of the target module (f32 or bf16)
    class_vector : f32[128]  (SimpleInputParametizer.class_vector)
    channel      : static int, channel whose mean activation is the loss
    reg          : static float, L2 regularization weight
    force_pallas : run the Pallas path even for small inputs (tests / demo)
    """
    B, C, H, W = mappings.shape
    assert 0 <= channel < C
    # The module defines a fixed 128-dim class vector (BigGAN class embedding).
    assert class_vector.shape == (_LANES,)
    hw = H * W
    n = B * hw

    use_pallas = (force_pallas or n >= _MIN_PALLAS_ELEMS) and (hw % _LANES == 0)
    if not use_pallas:
        # Small or lane-ragged inputs: a fused XLA reduction already reads only
        # the channel bytes and avoids launch + pipeline overhead.
        chan = mappings[:, channel].astype(jnp.float32)
        cvf = class_vector.astype(jnp.float32)
        return jnp.mean(chan) + reg * jnp.sum(cvf * cvf)

    rows = hw // _LANES                       # 128-lane rows per (batch, channel)
    # Free metadata reshape of the contiguous NCHW buffer -> no copy, no cast.
    x4 = mappings.reshape(B, C, rows, _LANES)
    cv2d = class_vector.reshape(1, _LANES).astype(jnp.float32)

    if rows <= _MAX_TILE_ROWS:
        tile_rows, num_tiles = rows, 1        # full-extent block (always legal)
    else:
        tile_rows = _MAX_TILE_ROWS            # multiple of 8
        num_tiles = pl.cdiv(rows, tile_rows)
    mask_tail = (rows % tile_rows) != 0

    kernel = functools.partial(
        _channel_loss_kernel,
        reg=float(reg),
        inv_n=1.0 / float(n),
        tile_rows=tile_rows,
        total_rows=rows,
        mask_tail=mask_tail,
    )

    partials = pl.pallas_call(
        kernel,
        out_shape=jax.ShapeDtypeStruct((B, 8, _LANES), jnp.float32),
        grid=(B, num_tiles),
        in_specs=[
            # Squeezed batch/channel dims: DMA the channel directly from the
            # original buffer; kernel sees a (tile_rows, 128) ref.
            pl.BlockSpec((None, None, tile_rows, _LANES),
                         lambda b, t: (b, channel, t, 0)),
            # Constant index_map -> resident across the whole grid.
            pl.BlockSpec((1, _LANES), lambda b, t: (0, 0)),
        ],
        out_specs=pl.BlockSpec((None, 8, _LANES), lambda b, t: (b, 0, 0)),
        scratch_shapes=[pltpu.VMEM((8, _LANES), jnp.float32)],
        compiler_params=pltpu.CompilerParams(
            # Batch axis parallel (v7x megacore sharding); row-tile axis is the
            # resident reduction.
            dimension_semantics=("parallel", "arbitrary"),
            # 4 MiB f32 blocks double-buffered (~8 MiB) + small scratch:
            # explicit budget fits v5e/v6e (128 MiB) and v7x (64 MiB) easily.
            vmem_limit_bytes=32 * 1024 * 1024,
        ),
    )(x4, cv2d)

    # Tiny (B, 8, 128) collapse: sum of per-lane partial means + reg term.
    return jnp.sum(partials)


if __name__ == "__main__":
    key = jax.random.PRNGKey(0)
    k_act, k_cv = jax.random.split(key)

    # Small shapes consistent with the module: NCHW conv activations and the
    # 128-dim class vector of SimpleInputParametizer.
    B, C, H, W = 2, 4, 16, 16
    channel = 1
    reg = 0.05

    mappings = jax.random.normal(k_act, (B, C, H, W), dtype=jnp.float32)
    class_vector = 0.1 * jax.random.normal(k_cv, (128,), dtype=jnp.float32)

    out = channel_activation_with_class_reg(
        mappings, class_vector, channel=channel, reg=reg, force_pallas=True
    )
    out = jax.block_until_ready(out)

    # Pure-JAX reference for the same semantics.
    ref = jnp.mean(mappings[:, channel]) + reg * jnp.sum(class_vector ** 2)
    assert jnp.allclose(out, ref, rtol=1e-5, atol=1e-5), (out, ref)

    # TODO(synk): SimpleInputParametizer's noise clamp/squeeze/cat forward and
    # autograd are outside this loss forward and are not implemented here.
    print("KERNEL_OK")
</pallas_src>

<mosaic_0001>
module attributes {stable_mosaic.version = 11 : i64} {
  func.func @_channel_loss_kernel(%arg0: i32, %arg1: i32, %arg2: memref<1x1x2x128xf32, #tpu.memory_space<vmem>>, %arg3: memref<1x128xf32, #tpu.memory_space<vmem>>, %arg4: memref<1x8x128xf32, #tpu.memory_space<vmem>>, %arg5: memref<8x128xf32, #tpu.memory_space<vmem>>) attributes {dimension_semantics = [#tpu.dimension_semantics<parallel>, #tpu.dimension_semantics<arbitrary>], iteration_bounds = array<i64: 2, 1>, scalar_prefetch = 0 : i64, scratch_operands = 1 : i64, tpu.core_type = #tpu.core_type<tc>, window_params = [{transform_indices = @transform_0, window_bounds = array<i64: 1, 1, 2, 128>}, {pipeline_mode = #tpu.pipeline_mode<synchronous>, transform_indices = @transform_1, window_bounds = array<i64: 1, 128>}, {transform_indices = @transform_2, window_bounds = array<i64: 1, 8, 128>}]} {
    %c0_i32 = arith.constant 0 : i32
    %0 = arith.cmpi eq, %arg1, %c0_i32 : i32
    %1 = arith.extui %0 : i1 to i32
    %c0_i32_0 = arith.constant 0 : i32
    %2 = arith.cmpi ne, %1, %c0_i32_0 : i32
    scf.if %2 {
      %cst_10 = arith.constant 0.000000e+00 : f32
      %13 = vector.broadcast %cst_10 : f32 to vector<8x128xf32>
      %c0_11 = arith.constant 0 : index
      %c0_12 = arith.constant 0 : index
      %14 = vector.load %arg5[%c0_11, %c0_12] : memref<8x128xf32, #tpu.memory_space<vmem>>, vector<8x128xf32>
      tpu.vector_store %arg5[%c0_11, %c0_12], %13 {strides = array<i32>} : memref<8x128xf32, #tpu.memory_space<vmem>>, vector<8x128xf32>,
    } else {
    }
    %c0 = arith.constant 0 : index
    %c0_1 = arith.constant 0 : index
    %c0_2 = arith.constant 0 : index
    %c0_3 = arith.constant 0 : index
    %3 = vector.load %arg2[%c0, %c0_1, %c0_2, %c0_3] : memref<1x1x2x128xf32, #tpu.memory_space<vmem>>, vector<1x1x2x128xf32>
    %4 = vector.shape_cast %3 : vector<1x1x2x128xf32> to vector<2x128xf32>
    %c0_4 = arith.constant 0 : index
    %c0_5 = arith.constant 0 : index
    %5 = vector.load %arg5[%c0_4, %c0_5] : memref<8x128xf32, #tpu.memory_space<vmem>>, vector<1x128xf32>
    %cst = arith.constant dense<0.000000e+00> : vector<128xf32>
    %6 = vector.multi_reduction <add>, %4, %cst [0] : vector<2x128xf32> to vector<128xf32>
    %7 = vector.shape_cast %6 : vector<128xf32> to vector<1x128xf32>
    %8 = arith.addf %5, %7 : vector<1x128xf32>
    %c0_6 = arith.constant 0 : index
    %c0_7 = arith.constant 0 : index
    %9 = vector.load %arg5[%c0_6, %c0_7] : memref<8x128xf32, #tpu.memory_space<vmem>>, vector<1x128xf32>
    tpu.vector_store %arg5[%c0_6, %c0_7], %8 {strides = array<i32>} : memref<8x128xf32, #tpu.memory_space<vmem>>, vector<1x128xf32>,
    %c0_i32_8 = arith.constant 0 : i32
    %10 = arith.cmpi eq, %arg1, %c0_i32_8 : i32
    %11 = arith.extui %10 : i1 to i32
    %c0_i32_9 = arith.constant 0 : i32
    %12 = arith.cmpi ne, %11, %c0_i32_9 : i32
    scf.if %12 {
      %c0_10 = arith.constant 0 : index
      %c0_11 = arith.constant 0 : index
      %13 = vector.load %arg5[%c0_10, %c0_11] : memref<8x128xf32, #tpu.memory_space<vmem>>, vector<8x128xf32>
      %cst_12 = arith.constant 0.001953125 : f32
      %14 = vector.broadcast %cst_12 : f32 to vector<8x128xf32>
      %15 = arith.mulf %13, %14 : vector<8x128xf32>
      %c0_13 = arith.constant 0 : index
      %c0_14 = arith.constant 0 : index
      %16 = vector.load %arg3[%c0_13, %c0_14] : memref<1x128xf32, #tpu.memory_space<vmem>>, vector<1x128xf32>
      %c1_i32 = arith.constant 1 : i32
      %17 = arith.cmpi eq, %arg0, %c1_i32 : i32
      %18 = arith.extui %17 : i1 to i32
      %19 = arith.sitofp %18 : i32 to f32
      %20 = arith.mulf %16, %16 : vector<1x128xf32>
      %cst_15 = arith.constant 6.250000e-03 : f32
      %21 = vector.broadcast %cst_15 : f32 to vector<1x128xf32>
      %22 = arith.mulf %21, %20 : vector<1x128xf32>
      %23 = vector.broadcast %19 : f32 to vector<1x128xf32>
      %24 = arith.mulf %23, %22 : vector<1x128xf32>
      %25 = vector.broadcast %24 : vector<1x128xf32> to vector<8x128xf32>
      %26 = arith.addf %15, %25 : vector<8x128xf32>
      %c0_16 = arith.constant 0 : index
      %c0_17 = arith.constant 0 : index
      %c0_18 = arith.constant 0 : index
      %27 = vector.load %arg4[%c0_16, %c0_17, %c0_18] : memref<1x8x128xf32, #tpu.memory_space<vmem>>, vector<1x8x128xf32>
      %28 = vector.shape_cast %27 : vector<1x8x128xf32> to vector<8x128xf32>
      %29 = vector.shape_cast %26 : vector<8x128xf32> to vector<1x8x128xf32>
      tpu.vector_store %arg4[%c0_16, %c0_17, %c0_18], %29 {strides = array<i32>} : memref<1x8x128xf32, #tpu.memory_space<vmem>>, vector<1x8x128xf32>,
    } else {
    }
    return
  }
  func.func @transform_0(%arg0: i32, %arg1: i32) -> (i32, i32, i32, i32) {
    %c1_i32 = arith.constant 1 : i32
    %c0_i32 = arith.constant 0 : i32
    %c0_i32_0 = arith.constant 0 : i32
    return %arg0, %c1_i32, %arg1, %c0_i32 : i32, i32, i32, i32
  }
  func.func @transform_1(%arg0: i32, %arg1: i32) -> (i32, i32) {
    %c0_i32 = arith.constant 0 : i32
    %c0_i32_0 = arith.constant 0 : i32
    %c0_i32_1 = arith.constant 0 : i32
    return %c0_i32, %c0_i32_0 : i32, i32
  }
  func.func @transform_2(%arg0: i32, %arg1: i32) -> (i32, i32, i32) {
    %c0_i32 = arith.constant 0 : i32
    %c0_i32_0 = arith.constant 0 : i32
    %c0_i32_1 = arith.constant 0 : i32
    return %arg0, %c0_i32, %c0_i32_0 : i32, i32, i32
  }
}

</mosaic_0001>

<llo_original>
// kernel: tpu_custom_call.1
$region0: #{tpu_custom_call.1}
  #allocation0 [shape = 'u32[]', space=smem, size = 0x4, offset = 0x4, fixed_abs, tag = 'smem constant byte address 0x4 - core index']
  #allocation1 [shape = 'u32[144,128]{1,0:T(1,128)}', space=vmem, size = 0x12000, scoped, tag = 'internal scratch']
  #allocation2 [shape = 'f32[8,128]{1,0:T(8,128)}', space=vmem, size = 0x1000, scoped, tag = 'scratch operand']
  %s0 = inlined_call_operand.hbm [shape: f32[2,4,2,128], index: 0, kind: input, shape index: {}]
  %s1 = inlined_call_operand.vmem [shape: f32[1,128], index: 1, kind: input, shape index: {}]
  %s2 = inlined_call_operand.hbm [shape: f32[2,8,128], index: 2, kind: output, shape index: {}]
  %s3 = sld [smem:[#allocation0]]
  $region53: #{tpu_custom_call.1} parent=0
    _
  %s5 = ssub.s32 1, %s3
  %s6 = scalar_select 0, %s5, %s3
  $region1: #{tpu_custom_call.1} parent=0
    #allocation3 [shape = 'u8[2048]{0}', space=vmem, size = 0x800, scoped, tag = 'input window, operand 0']
    #allocation4 [shape = 's32[2]{0}', space=sflag, size = 0x8, scoped, tag = 'scoped memory for tpu_custom_call.1']
    #allocation5 [shape = 's32[2]{0}', space=sflag, size = 0x8, scoped, tag = 'scoped memory for tpu_custom_call.1']
    #allocation6 [shape = 'u8[8192]{0}', space=vmem, size = 0x2000, scoped, tag = 'output window, operand 0']
    %7 = vsyncpa [#allocation4], 0
    %s8 = scalar_lea.sflag [#allocation4], 1
    %9 = vsyncpa %s8, 0
    %10 = vsyncpa [#allocation5], 0
    %s11 = scalar_lea.sflag [#allocation5], 1
    %12 = vsyncpa %s11, 0
    loop: start=0, step=1, limit=4
    $region2: #{tpu_custom_call.1} parent=1 // loop_pre_header
      _
    $region3: #{tpu_custom_call.1} parent=1 // loop_header
      %s14 = sphi 0, %s18
      %p15 = scmp.ge.s32.totalorder %s14, 4
      %s21 = sphi 0, %s33
      %s22 = sphi 0, %s29
      %s23 = sphi 0, %s21
      %s24 = sphi 0, %s22
      %s25 = sphi 0, %s23
      %s26 = sphi 0, %s24
      %s38 = sphi 0, %s40
      %s41 = sphi 0, %s38
      %s42 = sphi 0, %s41
      %s58 = sphi 0, %s42
      %s62 = sphi 0, %s62
      %s64 = sphi 0, %s62
      %s65 = sphi 0, %s64
      %s79 = sphi 0, %s65
      %s85 = sphi 0, %s87
      %s88 = sphi 0, %s85
      %s89 = sphi 0, %s88
      %s105 = sphi 0, %s89
    $region4: #{tpu_custom_call.1} parent=1 // loop_header_branch
      %17 = sbr.rel (%p15) target = $region8
    $region5: #{tpu_custom_call.1} parent=1 // loop_body
      %s19 = ssub.s32 %s14, 1
      %s20 = ssub.s32 %s14, 2
      %s27 = sadd.s32 1, %s22
      %p28 = scmp.ge.s32.totalorder %s27, 1
      %s29 = scalar_select %p28, 0, %s27
      %s30 = sadd.s32 1, %s21
      %s31 = scalar_select %p28, %s30, %s21
      %p32 = scmp.ge.s32.totalorder %s31, 2
      %s33 = scalar_select %p32, 0, %s31
      %s34 = ssub.s32 %s21, %s33
      %s35 = ssub.s32 %s22, %s29
      %s36 = sor.u32 %s34, %s35
      %p37 = scmp.eq.s32.totalorder %s36, 0
      %s39 = sadd.s32 %s38, 1
      %s40 = scalar_select %p37, %s38, %s39
      %p43 = pneg %p37
      %p44 = scmp.eq.s32.totalorder %s14, 1
      %p45 = por %p43, %p44
      %p46 = scmp.ne.s32.totalorder %s38, %s41
      %p47 = scmp.eq.s32.totalorder %s14, 0
      %p48 = por %p46, %p47
      %p49 = scmp.ne.s32.totalorder %s38, %s41
      %p50 = scmp.eq.s32.totalorder %s19, 1
      %p51 = por %p49, %p50
      %p52 = scmp.ne.s32.totalorder %s41, %s42
      %p53 = scmp.eq.s32.totalorder %s19, 0
      %p54 = por %p52, %p53
      %p55 = scmp.ne.s32.totalorder %s41, %s42
      %p56 = scmp.eq.s32.totalorder %s20, 1
      %p57 = por %p55, %p56
      %p59 = scmp.ne.s32.totalorder %s42, %s58
      %p60 = scmp.eq.s32.totalorder %s20, 0
      %p61 = por %p59, %p60
      %s63 = sadd.s32 %s62, 1
      %p66 = scmp.eq.s32.totalorder %s14, 1
      %p67 = scmp.ne.s32.totalorder %s62, %s64
      %p68 = scmp.eq.s32.totalorder %s14, 0
      %p69 = por %p67, %p68
      %p70 = scmp.ne.s32.totalorder %s62, %s64
      %p71 = scmp.eq.s32.totalorder %s19, 1
      %p72 = por %p70, %p71
      %p73 = scmp.ne.s32.totalorder %s64, %s65
      %p74 = scmp.eq.s32.totalorder %s19, 0
      %p75 = por %p73, %p74
      %p76 = scmp.ne.s32.totalorder %s64, %s65
      %p77 = scmp.eq.s32.totalorder %s20, 1
      %p78 = por %p76, %p77
      %p80 = scmp.ne.s32.totalorder %s65, %s79
      %p81 = scmp.eq.s32.totalorder %s20, 0
      %p82 = por %p80, %p81
      %s83 = ssub.s32 %s21, %s33
      %p84 = scmp.eq.s32.totalorder %s83, 0
      %s86 = sadd.s32 %s85, 1
      %s87 = scalar_select %p84, %s85, %s86
      %p90 = pneg %p84
      %p91 = scmp.eq.s32.totalorder %s14, 1
      %p92 = por %p90, %p91
      %p93 = scmp.ne.s32.totalorder %s85, %s88
      %p94 = scmp.eq.s32.totalorder %s14, 0
      %p95 = por %p93, %p94
      %p96 = scmp.ne.s32.totalorder %s85, %s88
      %p97 = scmp.eq.s32.totalorder %s19, 1
      %p98 = por %p96, %p97
      %p99 = scmp.ne.s32.totalorder %s88, %s89
      %p100 = scmp.eq.s32.totalorder %s19, 0
      %p101 = por %p99, %p100
      %p102 = scmp.ne.s32.totalorder %s88, %s89
      %p103 = scmp.eq.s32.totalorder %s20, 1
      %p104 = por %p102, %p103
      %p106 = scmp.ne.s32.totalorder %s89, %s105
      %p107 = scmp.eq.s32.totalorder %s20, 0
      %p108 = por %p106, %p107
      %p109 = scmp.le.s32.totalorder 1, %s14
      %p110 = scmp.lt.s32.totalorder %s14, 3
      %p111 = pnand %p109, %p110
      %p112 = pneg %p111
      // Predicated region
      $region9: #{tpu_custom_call.1} parent=5 // pred_check
        _
      $region10: #{tpu_custom_call.1} parent=5 // pred_check_branch
        %114 = sbr.rel (%p111) target = $region12
      $region11: #{tpu_custom_call.1} parent=5 // pred_region
        %s115 = ssub.s32 %s14, 1
        // Predicated region
        $region13: #{tpu_custom_call.1} parent=11 // pred_check
          %p116 = pneg %p75
        $region14: #{tpu_custom_call.1} parent=11 // pred_check_branch
          %118 = sbr.rel (%p116) target = $region16
        $region15: #{tpu_custom_call.1} parent=11 // pred_region
          _
        $region16: #{tpu_custom_call.1} parent=11 // pred_fallthru
          _
      $region12: #{tpu_custom_call.1} parent=5 // pred_fallthru
        _
      %p119 = scmp.lt.s32.totalorder %s14, 2
      // Predicated region
      $region17: #{tpu_custom_call.1} parent=5 // pred_check
        %p120 = pneg %p119
      $region18: #{tpu_custom_call.1} parent=5 // pred_check_branch
        %122 = sbr.rel (%p120) target = $region20
      $region19: #{tpu_custom_call.1} parent=5 // pred_region
        // Predicated region
        $region21: #{tpu_custom_call.1} parent=19 // pred_check
          %p123 = pneg %p48
        $region22: #{tpu_custom_call.1} parent=19 // pred_check_branch
          %125 = sbr.rel (%p123) target = $region24
        $region23: #{tpu_custom_call.1} parent=19 // pred_region
          %s126 = sand.u32 %s38, 1
          %s127 = scalar_lea.sflag [#allocation4], %s126
          %s128 = sand.u32 %s38, 1
          %s129 = smul.addr %s128, 2
          %s130 = scalar_lea.vmem [#allocation3], %s129
          %s132 = ssub.s32 32, 32
          %133 = vsyncadd %s127, %s132
          %s134 = sadd.s32 %s22, 1
          %s135 = smul.addr %s21, 4
          %s136 = sadd.s32 %s134, %s135
          %s137 = smul.addr %s136, 32
          %s138 = scalar_lea.hbm %s0, %s137
          %s140 = sshll.u32 %s130, 4
          %s141 = int_to_ptr.vmem [resolvable:$true] %s140
          %143 = dma.hbm_to_vmem [thread:$0]  %s138, 32, %s141, %s127
        $region24: #{tpu_custom_call.1} parent=19 // pred_fallthru
          _
      $region20: #{tpu_custom_call.1} parent=5 // pred_fallthru
        _
      %p144 = scmp.le.s32.totalorder 1, %s14
      %p145 = scmp.lt.s32.totalorder %s14, 3
      %p146 = pnand %p144, %p145
      %p147 = pneg %p146
      // Predicated region
      $region25: #{tpu_custom_call.1} parent=5 // pred_check
        _
      $region26: #{tpu_custom_call.1} parent=5 // pred_check_branch
        %149 = sbr.rel (%p146) target = $region28
      $region27: #{tpu_custom_call.1} parent=5 // pred_region
        %s150 = ssub.s32 %s14, 1
        %s151 = sand.u32 %s41, 1
        %s152 = scalar_lea.sflag [#allocation4], %s151
        %s153 = sand.u32 %s41, 1
        %s154 = smul.addr %s153, 2
        %s155 = scalar_lea.vmem [#allocation3], %s154
        // Predicated region
        $region29: #{tpu_custom_call.1} parent=27 // pred_check
          %p156 = pneg %p54
        $region30: #{tpu_custom_call.1} parent=27 // pred_check_branch
          %158 = sbr.rel (%p156) target = $region32
        $region31: #{tpu_custom_call.1} parent=27 // pred_region
          %159 = dma.done %s152, 32
        $region32: #{tpu_custom_call.1} parent=27 // pred_fallthru
          _
        %s160 = sand.u32 %s41, 1
        %s161 = scalar_lea.sflag [#allocation4], %s160
        %s162 = sand.u32 %s41, 1
        %s163 = smul.addr %s162, 2
        %s164 = scalar_lea.vmem [#allocation3], %s163
        %p165 = pneg %p54
        %p166 = pneg %p51
        %p167 = pneg %p75
        %p168 = pneg %p72
        %p169 = pneg %p101
        %p170 = pneg %p98
        %s171 = sand.u32 %s88, 1
        %s172 = scalar_lea.sflag [#allocation5], %s171
        %s173 = sand.u32 %s88, 1
        %s174 = smul.addr %s173, 8
        %s175 = scalar_lea.vmem [#allocation6], %s174
        %p176 = scmp.eq.s32.totalorder %s24, 0
        // Predicated region
        $region33: #{tpu_custom_call.1} parent=27 // pred_check
          %p177 = pneg %p176
        $region34: #{tpu_custom_call.1} parent=27 // pred_check_branch
          %179 = sbr.rel (%p177) target = $region36
        $region35: #{tpu_custom_call.1} parent=27 // pred_region
          %180 = vst [vmem:[#allocation2] sm:$0xff] 0.0
        $region36: #{tpu_custom_call.1} parent=27 // pred_fallthru
          _
        %v181 = vld [vmem:[%s155] sm:$0x3]
        %v182 = vld [vmem:[#allocation2] sm:$0x1]
        %vm183 = vcmask 1041408
        %v184 = vsel %vm183, %v181, 0.0
        %v185 = vrot.slane %v184, 4
        %v186 = vadd.f32 %v184, %v185
        %v187 = vrot.slane %v186, 2
        %v188 = vadd.f32 %v186, %v187
        %v189 = vrot.slane %v188, 1
        %v190 = vadd.f32 %v188, %v189
        %v191 = vadd.f32 %v182, %v190
        %192 = vst [vmem:[#allocation2] sm:$0x1] %v191
        // Predicated region
        $region37: #{tpu_custom_call.1} parent=27 // pred_check
          %p193 = pneg %p176
        $region38: #{tpu_custom_call.1} parent=27 // pred_check_branch
          %195 = sbr.rel (%p193) target = $region40
        $region39: #{tpu_custom_call.1} parent=27 // pred_region
          %v196 = vld [vmem:[#allocation2] sm:$0xff]
          %v197 = vmul.f32 %v196, 0.001953125
          %v198 = vld [vmem:[%s1] sm:$0x1]
          %p199 = scmp.eq.s32.totalorder %s23, 1
          %s200 = scalar_select %p199, 1, 0
          %s201 = scvt.s32.f32 %s200
          %v202 = vmul.f32 %v198, %v198
          %v203 = vmul.f32 %v202, 0.00625
          %v204 = vstv %s201
          %v205 = vmul.f32 %v204, %v203
          %v207 = vlaneseq
          %v208 = vshrl.u32 %v207, 7
          %v209 = vsub.s32 0, %v208
          %v210 = vrot.slane %v205, %v209
          %v212 = vadd.f32 %v197, %v210
          %213 = vst [vmem:[%s175] sm:$0xff] %v212
        $region40: #{tpu_custom_call.1} parent=27 // pred_fallthru
          _
        %s214 = sand.u32 %s88, 1
        %s215 = scalar_lea.sflag [#allocation5], %s214
        %s216 = sand.u32 %s88, 1
        %s217 = smul.addr %s216, 8
        %s218 = scalar_lea.vmem [#allocation6], %s217
        // Predicated region
        $region41: #{tpu_custom_call.1} parent=27 // pred_check
          %p219 = pneg %p98
        $region42: #{tpu_custom_call.1} parent=27 // pred_check_branch
          %221 = sbr.rel (%p219) target = $region44
        $region43: #{tpu_custom_call.1} parent=27 // pred_region
          %s223 = ssub.s32 128, 128
          %224 = vsyncadd %s215, %s223
          %s225 = smul.addr %s23, 128
          %s226 = scalar_lea.hbm %s2, %s225
          %s228 = sshll.u32 %s218, 4
          %s229 = int_to_ptr.vmem [resolvable:$true] %s228
          %231 = dma.vmem_to_hbm [thread:$0]  %s229, 128, %s226, %s215
        $region44: #{tpu_custom_call.1} parent=27 // pred_fallthru
          _
      $region28: #{tpu_custom_call.1} parent=5 // pred_fallthru
        _
      %p232 = scmp.le.s32.totalorder 2, %s14
      // Predicated region
      $region45: #{tpu_custom_call.1} parent=5 // pred_check
        %p233 = pneg %p232
      $region46: #{tpu_custom_call.1} parent=5 // pred_check_branch
        %235 = sbr.rel (%p233) target = $region48
      $region47: #{tpu_custom_call.1} parent=5 // pred_region
        %s236 = ssub.s32 %s14, 2
        // Predicated region
        $region49: #{tpu_custom_call.1} parent=47 // pred_check
          %p237 = pneg %p104
        $region50: #{tpu_custom_call.1} parent=47 // pred_check_branch
          %239 = sbr.rel (%p237) target = $region52
        $region51: #{tpu_custom_call.1} parent=47 // pred_region
          %s240 = sand.u32 %s89, 1
          %s241 = scalar_lea.sflag [#allocation5], %s240
          %s242 = sand.u32 %s89, 1
          %s243 = smul.addr %s242, 8
          %s244 = scalar_lea.vmem [#allocation6], %s243
          %245 = dma.done %s241, 128
        $region52: #{tpu_custom_call.1} parent=47 // pred_fallthru
          _
      $region48: #{tpu_custom_call.1} parent=5 // pred_fallthru
        _
    $region6: #{tpu_custom_call.1} parent=1 // loop_footer
      %s18 = sadd.s32 1, %s14
    $region7: #{tpu_custom_call.1} parent=1 // loop_footer_branch
      %13 = sbr.rel target = $region3
    $region8: #{tpu_custom_call.1} parent=1 // loop_exit
      _
    %246 = vsyncpa [#allocation4], 1
    %s247 = scalar_lea.sflag [#allocation4], 1
    %248 = vsyncpa %s247, 1
    %249 = vsyncpa [#allocation5], 1
    %s250 = scalar_lea.sflag [#allocation5], 1
    %251 = vsyncpa %s250, 1

</llo_original>
